<compile_context>
chip_gen: v7x
topology: tpu7x:2x2x1
jax: 0.10.0
libtpu: 0.0.40
codegen_flags: <defaults>
</compile_context>

<pallas_src>
import math

import jax
import jax.numpy as jnp
from jax.experimental import pallas as pl
from jax.experimental.pallas import tpu as pltpu

TARGET_INTENSITY = 0.5


def _choose_lane_fold(H, wc, max_lane=1 << 16):
    """Smallest r dividing H such that r*W*C is a multiple of 128 (lane-dense)."""
    if wc % 128 == 0:
        return 1
    r = 128 // math.gcd(wc, 128)
    if H % r == 0 and r * wc <= max_lane:
        return r
    # TODO(synk): H not divisible by the lane-fold factor falls back to masked
    # lanes (r=1); a padded/ragged lane layout would recover full density.
    return 1


def _choose_tile_rows(H2, row_bytes, target_bytes=3 << 20):
    """Largest multiple-of-8 divisor of H2 fitting a ~3 MiB/input byte budget."""
    budget = max(1, target_bytes // max(row_bytes, 1))
    divs = [t for t in range(1, H2 + 1) if H2 % t == 0]
    div8 = [t for t in divs if t % 8 == 0]
    fit8 = [t for t in div8 if t <= budget]
    if fit8:
        return max(fit8)
    if div8:
        return min(div8)          # only 8-aligned option (may exceed budget)
    # TODO(synk): H/r with no multiple-of-8 divisor uses one full-height tile
    # (loses pipelining); a masked tail tile would handle this better.
    return H2


def _choose_fold(tile_rows):
    """Largest divisor of tile_rows that is <= 8 (scratch sublane count)."""
    for f in range(min(8, tile_rows), 0, -1):
        if tile_rows % f == 0:
            return f
    return 1


def _make_stats_kernel(tile_rows, fold):
    nfull = tile_rows // fold

    def fold_rows(x):
        # Fold (tile_rows, L) -> (fold, L) with static-slice VPU adds only.
        if nfull == 1:
            return x
        acc = x[0:fold, :]
        for t in range(1, nfull):
            acc = acc + x[t * fold:(t + 1) * fold, :]
        return acc

    def kernel(d_ref, j_ref, out_ref, sj_ref, sj2_ref, sd_ref, sd2_ref):
        h = pl.program_id(2)

        @pl.when(h == 0)
        def _init():
            sj_ref[...] = jnp.zeros_like(sj_ref)
            sj2_ref[...] = jnp.zeros_like(sj2_ref)
            sd_ref[...] = jnp.zeros_like(sd_ref)
            sd2_ref[...] = jnp.zeros_like(sd2_ref)

        # Native-dtype load, in-register upcast (halves HBM bytes for bf16).
        d = d_ref[0].astype(jnp.float32)
        j = jnp.clip(j_ref[0].astype(jnp.float32), 0.0, 1.0)

        # Raw one-pass moments (no target-shift subtraction in the hot loop).
        sj_ref[...] += fold_rows(j)
        sj2_ref[...] += fold_rows(j * j)
        sd_ref[...] += fold_rows(d)
        sd2_ref[...] += fold_rows(d * d)

        @pl.when(h == pl.num_programs(2) - 1)
        def _finalize():
            # Four separate row stores: avoids a sublane concat/relayout.
            out_ref[0, 0, 0:1, :] = jnp.sum(sj_ref[...], axis=0, keepdims=True)
            out_ref[0, 0, 1:2, :] = jnp.sum(sj2_ref[...], axis=0, keepdims=True)
            out_ref[0, 0, 2:3, :] = jnp.sum(sd_ref[...], axis=0, keepdims=True)
            out_ref[0, 0, 3:4, :] = jnp.sum(sd2_ref[...], axis=0, keepdims=True)

    return kernel


def deattenuate_loss(direct, J, target_intensity=TARGET_INTENSITY, tile_rows=None):
    """direct, J: arrays of shape [N, H, W, C] (NHWC), any float dtype.

    `tile_rows` (optional) tiles the lane-folded H axis (H / r rows) and must
    divide it; multiple of 8 unless it equals the full folded height.
    """
    assert direct.shape == J.shape, (direct.shape, J.shape)
    N, H, W, C = J.shape
    wc = W * C
    s = H * W

    # Lane-dense layout: fold r rows of H into lanes so the lane width is a
    # multiple of 128 whenever possible (free, contiguous reshape).
    r = _choose_lane_fold(H, wc)
    H2 = H // r
    L = r * wc
    d3 = direct.reshape(N, H2, L)
    j3 = J.reshape(N, H2, L)

    d_item = jnp.dtype(direct.dtype).itemsize
    j_item = jnp.dtype(J.dtype).itemsize
    if tile_rows is None:
        tile_rows = _choose_tile_rows(H2, L * max(d_item, j_item))
    assert H2 % tile_rows == 0, (tile_rows, H2)
    assert tile_rows % 8 == 0 or tile_rows == H2, (tile_rows, H2)
    fold = _choose_fold(tile_rows)
    n_h = H2 // tile_rows

    # Megacore hygiene: when N is odd (incl. N==1) split the H reduction into
    # two parallel halves so both TensorCores of a megacore part have work.
    hsplit = 2 if (N % 2 == 1 and n_h % 2 == 0 and n_h >= 2) else 1
    n_hs = n_h // hsplit

    kernel = _make_stats_kernel(tile_rows, fold)

    # VMEM budget: 2 inputs x 2 pipeline buffers, 2 x output block, scratch,
    # plus headroom; capped at ~3/4 of per-core VMEM (48 MiB on v7x).
    in_bytes = 2 * tile_rows * L * (d_item + j_item)      # double-buffered, both inputs
    out_bytes = 2 * 4 * L * 4
    scratch_bytes = 4 * fold * L * 4
    vmem_limit = in_bytes + out_bytes + scratch_bytes + (4 << 20)
    try:
        cap = (3 * int(pltpu.get_tpu_info().vmem_capacity_bytes)) // 4
    except Exception:  # pragma: no cover - info query unavailable
        cap = 48 << 20
    vmem_limit = int(min(max(vmem_limit, 8 << 20), min(cap, 48 << 20)))

    n_elems = N * H * W * C
    cost = pl.CostEstimate(
        flops=10 * n_elems,
        transcendentals=0,
        bytes_accessed=n_elems * (d_item + j_item) + N * hsplit * 4 * L * 4,
    )

    stats = pl.pallas_call(
        kernel,
        out_shape=jax.ShapeDtypeStruct((N, hsplit, 4, L), jnp.float32),
        grid_spec=pltpu.PrefetchScalarGridSpec(
            num_scalar_prefetch=0,
            grid=(N, hsplit, n_hs),
            in_specs=[
                pl.BlockSpec((1, tile_rows, L), lambda n, sp, h: (n, sp * n_hs + h, 0)),
                pl.BlockSpec((1, tile_rows, L), lambda n, sp, h: (n, sp * n_hs + h, 0)),
            ],
            out_specs=pl.BlockSpec((1, 1, 4, L), lambda n, sp, h: (n, sp, 0, 0)),
            scratch_shapes=[pltpu.VMEM((fold, L), jnp.float32)] * 4,
        ),
        compiler_params=pltpu.CompilerParams(
            dimension_semantics=("parallel", "parallel", "arbitrary"),
            vmem_limit_bytes=vmem_limit,
        ),
        cost_estimate=cost,
    )(d3, j3)

    # Tiny finalize on the XLA side: O(N*C) work.
    per_lane = stats.sum(axis=1)                              # (N, 4, L)
    per_nc = per_lane.reshape(N, 4, r * W, C).sum(axis=2)     # (N, 4, C)
    sum_j, sum_j2, sum_d, sum_d2 = (per_nc[:, i] for i in range(4))

    denom = float(s - 1) if s > 1 else 1.0  # guard H*W == 1 (torch would give NaN)
    mean_j = sum_j / s
    var_j = jnp.maximum(sum_j2 - sum_j * sum_j / s, 0.0) / denom
    var_d = jnp.maximum(sum_d2 - sum_d * sum_d / s, 0.0) / denom
    std_j = jnp.sqrt(var_j)
    std_d = jnp.sqrt(var_d)

    intensity_loss = jnp.mean((mean_j - target_intensity) ** 2)
    spatial_variation_loss = jnp.mean((std_j - std_d) ** 2)
    # Saturation term: the reference applies relu(-J)/relu(J-1) to the already
    # clamped J, so the term is identically zero -- skip the dead compute.
    saturation_loss = jnp.float32(0.0)
    return saturation_loss + intensity_loss + spatial_variation_loss


def _reference_loss(direct, J, target=TARGET_INTENSITY):
    # Pure-JAX reproduction of the PyTorch forward (NHWC, dims [1,2]).
    d = direct.astype(jnp.float32)
    Jc = jnp.clip(J.astype(jnp.float32), 0.0, 1.0)
    saturation_loss = jnp.mean((jnp.maximum(-Jc, 0.0) + jnp.maximum(Jc - 1.0, 0.0)) ** 2)
    init_spatial = jnp.std(d, axis=(1, 2), keepdims=True, ddof=1)
    channel_intensities = jnp.mean(Jc, axis=(1, 2), keepdims=True)
    channel_spatial = jnp.std(Jc, axis=(1, 2), keepdims=True, ddof=1)
    intensity_loss = jnp.mean((channel_intensities - target) ** 2)
    spatial_variation_loss = jnp.mean((channel_spatial - init_spatial) ** 2)
    return saturation_loss + intensity_loss + spatial_variation_loss


if __name__ == "__main__":
    key = jax.random.PRNGKey(0)

    def make_inputs(k, shape, j_dtype):
        k1, k2 = jax.random.split(k)
        direct = jax.random.uniform(k1, shape, dtype=jnp.float32)
        J = jax.random.uniform(k2, shape, dtype=jnp.float32, minval=-0.3, maxval=1.3)
        return direct, J.astype(j_dtype)

    # (shape NHWC, J dtype, forced tile_rows over the lane-folded H axis)
    cases = [
        ((2, 16, 16, 4), jnp.float32, None),   # lane-fold r=2 (L=128), single tile
        ((2, 32, 16, 4), jnp.float32, 8),      # multi-tile H reduction (grid accumulation)
        ((1, 32, 16, 4), jnp.float32, 8),      # odd N -> hsplit=2 megacore split path
        ((2, 16, 10, 3), jnp.float32, None),   # W*C=30: masked-lane fallback (r=1)
        ((1, 64, 16, 4), jnp.bfloat16, None),  # bf16 J, sublane fold loop (nfull=4)
    ]

    keys = jax.random.split(key, len(cases))
    for k, (shape, j_dtype, tr) in zip(keys, cases):
        direct, J = make_inputs(k, shape, j_dtype)
        ref = jax.block_until_ready(_reference_loss(direct, J))
        out = jax.block_until_ready(deattenuate_loss(direct, J, tile_rows=tr))
        assert jnp.isfinite(out), ("non-finite loss", shape, out)
        assert jnp.allclose(out, ref, rtol=5e-4, atol=1e-6), (shape, out, ref)
    print("KERNEL_OK")
</pallas_src>

<mosaic_0001>
module attributes {stable_mosaic.version = 11 : i64} {
  func.func @kernel(%arg0: i32, %arg1: i32, %arg2: i32, %arg3: memref<1x8x128xf32, #tpu.memory_space<vmem>>, %arg4: memref<1x8x128xf32, #tpu.memory_space<vmem>>, %arg5: memref<1x1x4x128xf32, #tpu.memory_space<vmem>>, %arg6: memref<8x128xf32, #tpu.memory_space<vmem>>, %arg7: memref<8x128xf32, #tpu.memory_space<vmem>>, %arg8: memref<8x128xf32, #tpu.memory_space<vmem>>, %arg9: memref<8x128xf32, #tpu.memory_space<vmem>>) attributes {dimension_semantics = [#tpu.dimension_semantics<parallel>, #tpu.dimension_semantics<parallel>, #tpu.dimension_semantics<arbitrary>], iteration_bounds = array<i64: 2, 1, 1>, scalar_prefetch = 0 : i64, scratch_operands = 4 : i64, tpu.core_type = #tpu.core_type<tc>, window_params = [{transform_indices = @transform_0, window_bounds = array<i64: 1, 8, 128>}, {transform_indices = @transform_1, window_bounds = array<i64: 1, 8, 128>}, {transform_indices = @transform_2, window_bounds = array<i64: 1, 1, 4, 128>}]} {
    %c0_i32 = arith.constant 0 : i32
    %0 = arith.cmpi eq, %arg2, %c0_i32 : i32
    %1 = arith.extui %0 : i1 to i32
    %c0_i32_0 = arith.constant 0 : i32
    %2 = arith.cmpi ne, %1, %c0_i32_0 : i32
    scf.if %2 {
      %cst_25 = arith.constant 0.000000e+00 : f32
      %28 = vector.broadcast %cst_25 : f32 to vector<8x128xf32>
      %c0_26 = arith.constant 0 : index
      %c0_27 = arith.constant 0 : index
      %29 = vector.load %arg6[%c0_26, %c0_27] : memref<8x128xf32, #tpu.memory_space<vmem>>, vector<8x128xf32>
      tpu.vector_store %arg6[%c0_26, %c0_27], %28 {strides = array<i32>} : memref<8x128xf32, #tpu.memory_space<vmem>>, vector<8x128xf32>,
      %cst_28 = arith.constant 0.000000e+00 : f32
      %30 = vector.broadcast %cst_28 : f32 to vector<8x128xf32>
      %c0_29 = arith.constant 0 : index
      %c0_30 = arith.constant 0 : index
      %31 = vector.load %arg7[%c0_29, %c0_30] : memref<8x128xf32, #tpu.memory_space<vmem>>, vector<8x128xf32>
      tpu.vector_store %arg7[%c0_29, %c0_30], %30 {strides = array<i32>} : memref<8x128xf32, #tpu.memory_space<vmem>>, vector<8x128xf32>,
      %cst_31 = arith.constant 0.000000e+00 : f32
      %32 = vector.broadcast %cst_31 : f32 to vector<8x128xf32>
      %c0_32 = arith.constant 0 : index
      %c0_33 = arith.constant 0 : index
      %33 = vector.load %arg8[%c0_32, %c0_33] : memref<8x128xf32, #tpu.memory_space<vmem>>, vector<8x128xf32>
      tpu.vector_store %arg8[%c0_32, %c0_33], %32 {strides = array<i32>} : memref<8x128xf32, #tpu.memory_space<vmem>>, vector<8x128xf32>,
      %cst_34 = arith.constant 0.000000e+00 : f32
      %34 = vector.broadcast %cst_34 : f32 to vector<8x128xf32>
      %c0_35 = arith.constant 0 : index
      %c0_36 = arith.constant 0 : index
      %35 = vector.load %arg9[%c0_35, %c0_36] : memref<8x128xf32, #tpu.memory_space<vmem>>, vector<8x128xf32>
      tpu.vector_store %arg9[%c0_35, %c0_36], %34 {strides = array<i32>} : memref<8x128xf32, #tpu.memory_space<vmem>>, vector<8x128xf32>,
    } else {
    }
    %c0 = arith.constant 0 : index
    %c0_1 = arith.constant 0 : index
    %c0_2 = arith.constant 0 : index
    %3 = vector.load %arg3[%c0, %c0_1, %c0_2] : memref<1x8x128xf32, #tpu.memory_space<vmem>>, vector<1x8x128xf32>
    %4 = vector.shape_cast %3 : vector<1x8x128xf32> to vector<8x128xf32>
    %c0_3 = arith.constant 0 : index
    %c0_4 = arith.constant 0 : index
    %c0_5 = arith.constant 0 : index
    %5 = vector.load %arg4[%c0_3, %c0_4, %c0_5] : memref<1x8x128xf32, #tpu.memory_space<vmem>>, vector<1x8x128xf32>
    %6 = vector.shape_cast %5 : vector<1x8x128xf32> to vector<8x128xf32>
    %cst = arith.constant 0.000000e+00 : f32
    %cst_6 = arith.constant 1.000000e+00 : f32
    %7 = vector.broadcast %cst : f32 to vector<8x128xf32>
    %8 = arith.maximumf %7, %6 : vector<8x128xf32>
    %9 = vector.broadcast %cst_6 : f32 to vector<8x128xf32>
    %10 = arith.minimumf %9, %8 : vector<8x128xf32>
    %c0_7 = arith.constant 0 : index
    %c0_8 = arith.constant 0 : index
    %11 = vector.load %arg6[%c0_7, %c0_8] : memref<8x128xf32, #tpu.memory_space<vmem>>, vector<8x128xf32>
    %12 = arith.addf %11, %10 : vector<8x128xf32>
    %c0_9 = arith.constant 0 : index
    %c0_10 = arith.constant 0 : index
    %13 = vector.load %arg6[%c0_9, %c0_10] : memref<8x128xf32, #tpu.memory_space<vmem>>, vector<8x128xf32>
    tpu.vector_store %arg6[%c0_9, %c0_10], %12 {strides = array<i32>} : memref<8x128xf32, #tpu.memory_space<vmem>>, vector<8x128xf32>,
    %c0_11 = arith.constant 0 : index
    %c0_12 = arith.constant 0 : index
    %14 = vector.load %arg7[%c0_11, %c0_12] : memref<8x128xf32, #tpu.memory_space<vmem>>, vector<8x128xf32>
    %15 = arith.mulf %10, %10 : vector<8x128xf32>
    %16 = arith.addf %14, %15 : vector<8x128xf32>
    %c0_13 = arith.constant 0 : index
    %c0_14 = arith.constant 0 : index
    %17 = vector.load %arg7[%c0_13, %c0_14] : memref<8x128xf32, #tpu.memory_space<vmem>>, vector<8x128xf32>
    tpu.vector_store %arg7[%c0_13, %c0_14], %16 {strides = array<i32>} : memref<8x128xf32, #tpu.memory_space<vmem>>, vector<8x128xf32>,
    %c0_15 = arith.constant 0 : index
    %c0_16 = arith.constant 0 : index
    %18 = vector.load %arg8[%c0_15, %c0_16] : memref<8x128xf32, #tpu.memory_space<vmem>>, vector<8x128xf32>
    %19 = arith.addf %18, %4 : vector<8x128xf32>
    %c0_17 = arith.constant 0 : index
    %c0_18 = arith.constant 0 : index
    %20 = vector.load %arg8[%c0_17, %c0_18] : memref<8x128xf32, #tpu.memory_space<vmem>>, vector<8x128xf32>
    tpu.vector_store %arg8[%c0_17, %c0_18], %19 {strides = array<i32>} : memref<8x128xf32, #tpu.memory_space<vmem>>, vector<8x128xf32>,
    %c0_19 = arith.constant 0 : index
    %c0_20 = arith.constant 0 : index
    %21 = vector.load %arg9[%c0_19, %c0_20] : memref<8x128xf32, #tpu.memory_space<vmem>>, vector<8x128xf32>
    %22 = arith.mulf %4, %4 : vector<8x128xf32>
    %23 = arith.addf %21, %22 : vector<8x128xf32>
    %c0_21 = arith.constant 0 : index
    %c0_22 = arith.constant 0 : index
    %24 = vector.load %arg9[%c0_21, %c0_22] : memref<8x128xf32, #tpu.memory_space<vmem>>, vector<8x128xf32>
    tpu.vector_store %arg9[%c0_21, %c0_22], %23 {strides = array<i32>} : memref<8x128xf32, #tpu.memory_space<vmem>>, vector<8x128xf32>,
    %c0_i32_23 = arith.constant 0 : i32
    %25 = arith.cmpi eq, %arg2, %c0_i32_23 : i32
    %26 = arith.extui %25 : i1 to i32
    %c0_i32_24 = arith.constant 0 : i32
    %27 = arith.cmpi ne, %26, %c0_i32_24 : i32
    scf.if %27 {
      %c0_25 = arith.constant 0 : index
      %c0_26 = arith.constant 0 : index
      %28 = vector.load %arg6[%c0_25, %c0_26] : memref<8x128xf32, #tpu.memory_space<vmem>>, vector<8x128xf32>
      %cst_27 = arith.constant dense<0.000000e+00> : vector<128xf32>
      %29 = vector.multi_reduction <add>, %28, %cst_27 [0] : vector<8x128xf32> to vector<128xf32>
      %30 = vector.shape_cast %29 : vector<128xf32> to vector<1x128xf32>
      %c0_28 = arith.constant 0 : index
      %c0_29 = arith.constant 0 : index
      %c0_30 = arith.constant 0 : index
      %c0_31 = arith.constant 0 : index
      %31 = vector.load %arg5[%c0_28, %c0_29, %c0_30, %c0_31] : memref<1x1x4x128xf32, #tpu.memory_space<vmem>>, vector<1x1x1x128xf32>
      %32 = vector.shape_cast %31 : vector<1x1x1x128xf32> to vector<1x128xf32>
      %33 = vector.shape_cast %30 : vector<1x128xf32> to vector<1x1x1x128xf32>
      tpu.vector_store %arg5[%c0_28, %c0_29, %c0_30, %c0_31], %33 {strides = array<i32>} : memref<1x1x4x128xf32, #tpu.memory_space<vmem>>, vector<1x1x1x128xf32>,
      %c0_32 = arith.constant 0 : index
      %c0_33 = arith.constant 0 : index
      %34 = vector.load %arg7[%c0_32, %c0_33] : memref<8x128xf32, #tpu.memory_space<vmem>>, vector<8x128xf32>
      %cst_34 = arith.constant dense<0.000000e+00> : vector<128xf32>
      %35 = vector.multi_reduction <add>, %34, %cst_34 [0] : vector<8x128xf32> to vector<128xf32>
      %36 = vector.shape_cast %35 : vector<128xf32> to vector<1x128xf32>
      %c0_35 = arith.constant 0 : index
      %c0_36 = arith.constant 0 : index
      %c1 = arith.constant 1 : index
      %c0_37 = arith.constant 0 : index
      %37 = vector.load %arg5[%c0_35, %c0_36, %c1, %c0_37] : memref<1x1x4x128xf32, #tpu.memory_space<vmem>>, vector<1x1x1x128xf32>
      %38 = vector.shape_cast %37 : vector<1x1x1x128xf32> to vector<1x128xf32>
      %39 = vector.shape_cast %36 : vector<1x128xf32> to vector<1x1x1x128xf32>
      tpu.vector_store %arg5[%c0_35, %c0_36, %c1, %c0_37], %39 {strides = array<i32>} : memref<1x1x4x128xf32, #tpu.memory_space<vmem>>, vector<1x1x1x128xf32>,
      %c0_38 = arith.constant 0 : index
      %c0_39 = arith.constant 0 : index
      %40 = vector.load %arg8[%c0_38, %c0_39] : memref<8x128xf32, #tpu.memory_space<vmem>>, vector<8x128xf32>
      %cst_40 = arith.constant dense<0.000000e+00> : vector<128xf32>
      %41 = vector.multi_reduction <add>, %40, %cst_40 [0] : vector<8x128xf32> to vector<128xf32>
      %42 = vector.shape_cast %41 : vector<128xf32> to vector<1x128xf32>
      %c0_41 = arith.constant 0 : index
      %c0_42 = arith.constant 0 : index
      %c2 = arith.constant 2 : index
      %c0_43 = arith.constant 0 : index
      %43 = vector.load %arg5[%c0_41, %c0_42, %c2, %c0_43] : memref<1x1x4x128xf32, #tpu.memory_space<vmem>>, vector<1x1x1x128xf32>
      %44 = vector.shape_cast %43 : vector<1x1x1x128xf32> to vector<1x128xf32>
      %45 = vector.shape_cast %42 : vector<1x128xf32> to vector<1x1x1x128xf32>
      tpu.vector_store %arg5[%c0_41, %c0_42, %c2, %c0_43], %45 {strides = array<i32>} : memref<1x1x4x128xf32, #tpu.memory_space<vmem>>, vector<1x1x1x128xf32>,
      %c0_44 = arith.constant 0 : index
      %c0_45 = arith.constant 0 : index
      %46 = vector.load %arg9[%c0_44, %c0_45] : memref<8x128xf32, #tpu.memory_space<vmem>>, vector<8x128xf32>
      %cst_46 = arith.constant dense<0.000000e+00> : vector<128xf32>
      %47 = vector.multi_reduction <add>, %46, %cst_46 [0] : vector<8x128xf32> to vector<128xf32>
      %48 = vector.shape_cast %47 : vector<128xf32> to vector<1x128xf32>
      %c0_47 = arith.constant 0 : index
      %c0_48 = arith.constant 0 : index
      %c3 = arith.constant 3 : index
      %c0_49 = arith.constant 0 : index
      %49 = vector.load %arg5[%c0_47, %c0_48, %c3, %c0_49] : memref<1x1x4x128xf32, #tpu.memory_space<vmem>>, vector<1x1x1x128xf32>
      %50 = vector.shape_cast %49 : vector<1x1x1x128xf32> to vector<1x128xf32>
      %51 = vector.shape_cast %48 : vector<1x128xf32> to vector<1x1x1x128xf32>
      tpu.vector_store %arg5[%c0_47, %c0_48, %c3, %c0_49], %51 {strides = array<i32>} : memref<1x1x4x128xf32, #tpu.memory_space<vmem>>, vector<1x1x1x128xf32>,
    } else {
    }
    return
  }
  func.func @transform_0(%arg0: i32, %arg1: i32, %arg2: i32) -> (i32, i32, i32) {
    %c1_i32 = arith.constant 1 : i32
    %0 = arith.muli %arg1, %c1_i32 : i32
    %1 = arith.addi %0, %arg2 : i32
    %c0_i32 = arith.constant 0 : i32
    %c0_i32_0 = arith.constant 0 : i32
    return %arg0, %1, %c0_i32 : i32, i32, i32
  }
  func.func @transform_1(%arg0: i32, %arg1: i32, %arg2: i32) -> (i32, i32, i32) {
    %c1_i32 = arith.constant 1 : i32
    %0 = arith.muli %arg1, %c1_i32 : i32
    %1 = arith.addi %0, %arg2 : i32
    %c0_i32 = arith.constant 0 : i32
    %c0_i32_0 = arith.constant 0 : i32
    return %arg0, %1, %c0_i32 : i32, i32, i32
  }
  func.func @transform_2(%arg0: i32, %arg1: i32, %arg2: i32) -> (i32, i32, i32, i32) {
    %c0_i32 = arith.constant 0 : i32
    %c0_i32_0 = arith.constant 0 : i32
    %c0_i32_1 = arith.constant 0 : i32
    return %arg0, %arg1, %c0_i32, %c0_i32_0 : i32, i32, i32, i32
  }
}

</mosaic_0001>

<llo_original>
// kernel: tpu_custom_call.1
$region0: #{tpu_custom_call.1}
  #allocation0 [shape = 'u32[]', space=smem, size = 0x4, offset = 0x4, fixed_abs, tag = 'smem constant byte address 0x4 - core index']
  #allocation1 [shape = 'u32[144,128]{1,0:T(1,128)}', space=vmem, size = 0x12000, scoped, tag = 'internal scratch']
  #allocation2 [shape = 'f32[8,128]{1,0:T(8,128)}', space=vmem, size = 0x1000, scoped, tag = 'scratch operand']
  #allocation3 [shape = 'f32[8,128]{1,0:T(8,128)}', space=vmem, size = 0x1000, scoped, tag = 'scratch operand']
  #allocation4 [shape = 'f32[8,128]{1,0:T(8,128)}', space=vmem, size = 0x1000, scoped, tag = 'scratch operand']
  #allocation5 [shape = 'f32[8,128]{1,0:T(8,128)}', space=vmem, size = 0x1000, scoped, tag = 'scratch operand']
  %s0 = inlined_call_operand.hbm [shape: f32[2,8,128], index: 0, kind: input, shape index: {}]
  %s1 = inlined_call_operand.hbm [shape: f32[2,8,128], index: 1, kind: input, shape index: {}]
  %s2 = inlined_call_operand.hbm [shape: f32[2,1,4,128], index: 2, kind: output, shape index: {}]
  %s3 = sld [smem:[#allocation0]]
  $region57: #{tpu_custom_call.1} parent=0
    _
  %s5 = ssub.s32 1, %s3
  %s6 = scalar_select 0, %s5, %s3
  $region1: #{tpu_custom_call.1} parent=0
    #allocation6 [shape = 'u8[8192]{0}', space=vmem, size = 0x2000, scoped, tag = 'input window, operand 0']
    #allocation7 [shape = 's32[2]{0}', space=sflag, size = 0x8, scoped, tag = 'scoped memory for tpu_custom_call.1']
    #allocation8 [shape = 's32[2]{0}', space=sflag, size = 0x8, scoped, tag = 'scoped memory for tpu_custom_call.1']
    #allocation9 [shape = 'u8[8192]{0}', space=vmem, size = 0x2000, scoped, tag = 'input window, operand 1']
    #allocation10 [shape = 's32[2]{0}', space=sflag, size = 0x8, scoped, tag = 'scoped memory for tpu_custom_call.1']
    #allocation11 [shape = 'u8[4096]{0}', space=vmem, size = 0x1000, scoped, tag = 'output window, operand 0']
    %7 = vsyncpa [#allocation7], 0
    %s8 = scalar_lea.sflag [#allocation7], 1
    %9 = vsyncpa %s8, 0
    %10 = vsyncpa [#allocation10], 0
    %s11 = scalar_lea.sflag [#allocation10], 1
    %12 = vsyncpa %s11, 0
    %13 = vsyncpa [#allocation8], 0
    %s14 = scalar_lea.sflag [#allocation8], 1
    %15 = vsyncpa %s14, 0
    loop: start=0, step=1, limit=4
    $region2: #{tpu_custom_call.1} parent=1 // loop_pre_header
      _
    $region3: #{tpu_custom_call.1} parent=1 // loop_header
      %s17 = sphi 0, %s21
      %p18 = scmp.ge.s32.totalorder %s17, 4
      %s24 = sphi 0, %s43
      %s25 = sphi 0, %s39
      %s26 = sphi 0, %s35
      %s27 = sphi 0, %s24
      %s28 = sphi 0, %s25
      %s29 = sphi 0, %s26
      %s30 = sphi 0, %s27
      %s31 = sphi 0, %s28
      %s32 = sphi 0, %s29
      %s50 = sphi 0, %s52
      %s53 = sphi 0, %s50
      %s54 = sphi 0, %s53
      %s70 = sphi 0, %s54
      %s80 = sphi 0, %s82
      %s83 = sphi 0, %s80
      %s84 = sphi 0, %s83
      %s100 = sphi 0, %s84
      %s108 = sphi 0, %s110
      %s111 = sphi 0, %s108
      %s112 = sphi 0, %s111
      %s128 = sphi 0, %s112
    $region4: #{tpu_custom_call.1} parent=1 // loop_header_branch
      %20 = sbr.rel (%p18) target = $region8
    $region5: #{tpu_custom_call.1} parent=1 // loop_body
      %s22 = ssub.s32 %s17, 1
      %s23 = ssub.s32 %s17, 2
      %s33 = sadd.s32 1, %s26
      %p34 = scmp.ge.s32.totalorder %s33, 1
      %s35 = scalar_select %p34, 0, %s33
      %s36 = sadd.s32 1, %s25
      %s37 = scalar_select %p34, %s36, %s25
      %p38 = scmp.ge.s32.totalorder %s37, 1
      %s39 = scalar_select %p38, 0, %s37
      %s40 = sadd.s32 1, %s24
      %s41 = scalar_select %p38, %s40, %s24
      %p42 = scmp.ge.s32.totalorder %s41, 2
      %s43 = scalar_select %p42, 0, %s41
      %s44 = sadd.s32 %s25, %s26
      %s45 = sadd.s32 %s39, %s35
      %s46 = ssub.s32 %s24, %s43
      %s47 = ssub.s32 %s44, %s45
      %s48 = sor.u32 %s46, %s47
      %p49 = scmp.eq.s32.totalorder %s48, 0
      %s51 = sadd.s32 %s50, 1
      %s52 = scalar_select %p49, %s50, %s51
      %p55 = pneg %p49
      %p56 = scmp.eq.s32.totalorder %s17, 1
      %p57 = por %p55, %p56
      %p58 = scmp.ne.s32.totalorder %s50, %s53
      %p59 = scmp.eq.s32.totalorder %s17, 0
      %p60 = por %p58, %p59
      %p61 = scmp.ne.s32.totalorder %s50, %s53
      %p62 = scmp.eq.s32.totalorder %s22, 1
      %p63 = por %p61, %p62
      %p64 = scmp.ne.s32.totalorder %s53, %s54
      %p65 = scmp.eq.s32.totalorder %s22, 0
      %p66 = por %p64, %p65
      %p67 = scmp.ne.s32.totalorder %s53, %s54
      %p68 = scmp.eq.s32.totalorder %s23, 1
      %p69 = por %p67, %p68
      %p71 = scmp.ne.s32.totalorder %s54, %s70
      %p72 = scmp.eq.s32.totalorder %s23, 0
      %p73 = por %p71, %p72
      %s74 = sadd.s32 %s25, %s26
      %s75 = sadd.s32 %s39, %s35
      %s76 = ssub.s32 %s24, %s43
      %s77 = ssub.s32 %s74, %s75
      %s78 = sor.u32 %s76, %s77
      %p79 = scmp.eq.s32.totalorder %s78, 0
      %s81 = sadd.s32 %s80, 1
      %s82 = scalar_select %p79, %s80, %s81
      %p85 = pneg %p79
      %p86 = scmp.eq.s32.totalorder %s17, 1
      %p87 = por %p85, %p86
      %p88 = scmp.ne.s32.totalorder %s80, %s83
      %p89 = scmp.eq.s32.totalorder %s17, 0
      %p90 = por %p88, %p89
      %p91 = scmp.ne.s32.totalorder %s80, %s83
      %p92 = scmp.eq.s32.totalorder %s22, 1
      %p93 = por %p91, %p92
      %p94 = scmp.ne.s32.totalorder %s83, %s84
      %p95 = scmp.eq.s32.totalorder %s22, 0
      %p96 = por %p94, %p95
      %p97 = scmp.ne.s32.totalorder %s83, %s84
      %p98 = scmp.eq.s32.totalorder %s23, 1
      %p99 = por %p97, %p98
      %p101 = scmp.ne.s32.totalorder %s84, %s100
      %p102 = scmp.eq.s32.totalorder %s23, 0
      %p103 = por %p101, %p102
      %s104 = ssub.s32 %s24, %s43
      %s105 = ssub.s32 %s25, %s39
      %s106 = sor.u32 %s104, %s105
      %p107 = scmp.eq.s32.totalorder %s106, 0
      %s109 = sadd.s32 %s108, 1
      %s110 = scalar_select %p107, %s108, %s109
      %p113 = pneg %p107
      %p114 = scmp.eq.s32.totalorder %s17, 1
      %p115 = por %p113, %p114
      %p116 = scmp.ne.s32.totalorder %s108, %s111
      %p117 = scmp.eq.s32.totalorder %s17, 0
      %p118 = por %p116, %p117
      %p119 = scmp.ne.s32.totalorder %s108, %s111
      %p120 = scmp.eq.s32.totalorder %s22, 1
      %p121 = por %p119, %p120
      %p122 = scmp.ne.s32.totalorder %s111, %s112
      %p123 = scmp.eq.s32.totalorder %s22, 0
      %p124 = por %p122, %p123
      %p125 = scmp.ne.s32.totalorder %s111, %s112
      %p126 = scmp.eq.s32.totalorder %s23, 1
      %p127 = por %p125, %p126
      %p129 = scmp.ne.s32.totalorder %s112, %s128
      %p130 = scmp.eq.s32.totalorder %s23, 0
      %p131 = por %p129, %p130
      %p132 = scmp.le.s32.totalorder 1, %s17
      %p133 = scmp.lt.s32.totalorder %s17, 3
      %p134 = pnand %p132, %p133
      %p135 = pneg %p134
      // Predicated region
      $region9: #{tpu_custom_call.1} parent=5 // pred_check
        _
      $region10: #{tpu_custom_call.1} parent=5 // pred_check_branch
        %137 = sbr.rel (%p134) target = $region12
      $region11: #{tpu_custom_call.1} parent=5 // pred_region
        %s138 = ssub.s32 %s17, 1
      $region12: #{tpu_custom_call.1} parent=5 // pred_fallthru
        _
      %p139 = scmp.lt.s32.totalorder %s17, 2
      // Predicated region
      $region13: #{tpu_custom_call.1} parent=5 // pred_check
        %p140 = pneg %p139
      $region14: #{tpu_custom_call.1} parent=5 // pred_check_branch
        %142 = sbr.rel (%p140) target = $region16
      $region15: #{tpu_custom_call.1} parent=5 // pred_region
        // Predicated region
        $region17: #{tpu_custom_call.1} parent=15 // pred_check
          %p143 = pneg %p60
        $region18: #{tpu_custom_call.1} parent=15 // pred_check_branch
          %145 = sbr.rel (%p143) target = $region20
        $region19: #{tpu_custom_call.1} parent=15 // pred_region
          %s146 = sand.u32 %s50, 1
          %s147 = scalar_lea.sflag [#allocation7], %s146
          %s148 = sand.u32 %s50, 1
          %s149 = smul.addr %s148, 8
          %s150 = scalar_lea.vmem [#allocation6], %s149
          %s151 = sadd.s32 %s25, %s26
          %s153 = ssub.s32 128, 128
          %154 = vsyncadd %s147, %s153
          %s155 = sadd.s32 %s151, %s24
          %s156 = smul.addr %s155, 128
          %s157 = scalar_lea.hbm %s0, %s156
          %s159 = sshll.u32 %s150, 4
          %s160 = int_to_ptr.vmem [resolvable:$true] %s159
          %162 = dma.hbm_to_vmem [thread:$0]  %s157, 128, %s160, %s147
        $region20: #{tpu_custom_call.1} parent=15 // pred_fallthru
          _
        // Predicated region
        $region21: #{tpu_custom_call.1} parent=15 // pred_check
          %p163 = pneg %p90
        $region22: #{tpu_custom_call.1} parent=15 // pred_check_branch
          %165 = sbr.rel (%p163) target = $region24
        $region23: #{tpu_custom_call.1} parent=15 // pred_region
          %s166 = sand.u32 %s80, 1
          %s167 = scalar_lea.sflag [#allocation10], %s166
          %s168 = sand.u32 %s80, 1
          %s169 = smul.addr %s168, 8
          %s170 = scalar_lea.vmem [#allocation9], %s169
          %s171 = sadd.s32 %s25, %s26
          %s173 = ssub.s32 128, 128
          %174 = vsyncadd %s167, %s173
          %s175 = sadd.s32 %s171, %s24
          %s176 = smul.addr %s175, 128
          %s177 = scalar_lea.hbm %s1, %s176
          %s179 = sshll.u32 %s170, 4
          %s180 = int_to_ptr.vmem [resolvable:$true] %s179
          %182 = dma.hbm_to_vmem [thread:$0]  %s177, 128, %s180, %s167
        $region24: #{tpu_custom_call.1} parent=15 // pred_fallthru
          _
      $region16: #{tpu_custom_call.1} parent=5 // pred_fallthru
        _
      %p183 = scmp.le.s32.totalorder 1, %s17
      %p184 = scmp.lt.s32.totalorder %s17, 3
      %p185 = pnand %p183, %p184
      %p186 = pneg %p185
      // Predicated region
      $region25: #{tpu_custom_call.1} parent=5 // pred_check
        _
      $region26: #{tpu_custom_call.1} parent=5 // pred_check_branch
        %188 = sbr.rel (%p185) target = $region28
      $region27: #{tpu_custom_call.1} parent=5 // pred_region
        %s189 = ssub.s32 %s17, 1
        %s190 = sand.u32 %s53, 1
        %s191 = scalar_lea.sflag [#allocation7], %s190
        %s192 = sand.u32 %s53, 1
        %s193 = smul.addr %s192, 8
        %s194 = scalar_lea.vmem [#allocation6], %s193
        // Predicated region
        $region29: #{tpu_custom_call.1} parent=27 // pred_check
          %p195 = pneg %p66
        $region30: #{tpu_custom_call.1} parent=27 // pred_check_branch
          %197 = sbr.rel (%p195) target = $region32
        $region31: #{tpu_custom_call.1} parent=27 // pred_region
          %198 = dma.done %s191, 128
        $region32: #{tpu_custom_call.1} parent=27 // pred_fallthru
          _
        %s199 = sand.u32 %s83, 1
        %s200 = scalar_lea.sflag [#allocation10], %s199
        %s201 = sand.u32 %s83, 1
        %s202 = smul.addr %s201, 8
        %s203 = scalar_lea.vmem [#allocation9], %s202
        // Predicated region
        $region33: #{tpu_custom_call.1} parent=27 // pred_check
          %p204 = pneg %p96
        $region34: #{tpu_custom_call.1} parent=27 // pred_check_branch
          %206 = sbr.rel (%p204) target = $region36
        $region35: #{tpu_custom_call.1} parent=27 // pred_region
          %207 = dma.done %s200, 128
        $region36: #{tpu_custom_call.1} parent=27 // pred_fallthru
          _
        %s208 = sand.u32 %s53, 1
        %s209 = scalar_lea.sflag [#allocation7], %s208
        %s210 = sand.u32 %s53, 1
        %s211 = smul.addr %s210, 8
        %s212 = scalar_lea.vmem [#allocation6], %s211
        %p213 = pneg %p66
        %p214 = pneg %p63
        %s215 = sand.u32 %s83, 1
        %s216 = scalar_lea.sflag [#allocation10], %s215
        %s217 = sand.u32 %s83, 1
        %s218 = smul.addr %s217, 8
        %s219 = scalar_lea.vmem [#allocation9], %s218
        %p220 = pneg %p96
        %p221 = pneg %p93
        %p222 = pneg %p124
        %p223 = pneg %p121
        %s224 = sand.u32 %s111, 1
        %s225 = scalar_lea.sflag [#allocation8], %s224
        %s226 = sand.u32 %s111, 1
        %s227 = smul.addr %s226, 4
        %s228 = scalar_lea.vmem [#allocation11], %s227
        %s229 = sadd.s32 %s28, %s29
        %s230 = sadd.s32 %s28, %s29
        %p231 = scmp.eq.s32.totalorder %s29, 0
        // Predicated region
        $region37: #{tpu_custom_call.1} parent=27 // pred_check
          %p232 = pneg %p231
        $region38: #{tpu_custom_call.1} parent=27 // pred_check_branch
          %234 = sbr.rel (%p232) target = $region40
        $region39: #{tpu_custom_call.1} parent=27 // pred_region
          %235 = vst [vmem:[#allocation2] sm:$0xff] 0.0
          %236 = vst [vmem:[#allocation3] sm:$0xff] 0.0
          %237 = vst [vmem:[#allocation4] sm:$0xff] 0.0
          %238 = vst [vmem:[#allocation5] sm:$0xff] 0.0
        $region40: #{tpu_custom_call.1} parent=27 // pred_fallthru
          _
        %v239 = vld [vmem:[%s194] sm:$0xff]
        %v240 = vld [vmem:[%s203] sm:$0xff]
        %v241 = vmax.f32 %v240, 0.0
        %v242 = vmin.f32 %v241, 1.0
        %v243 = vld [vmem:[#allocation2] sm:$0xff]
        %v244 = vadd.f32 %v243, %v242
        %245 = vst [vmem:[#allocation2] sm:$0xff] %v244
        %v246 = vld [vmem:[#allocation3] sm:$0xff]
        %v247 = vmul.f32 %v242, %v242
        %v248 = vadd.f32 %v246, %v247
        %249 = vst [vmem:[#allocation3] sm:$0xff] %v248
        %v250 = vld [vmem:[#allocation4] sm:$0xff]
        %v251 = vadd.f32 %v250, %v239
        %252 = vst [vmem:[#allocation4] sm:$0xff] %v251
        %v253 = vld [vmem:[#allocation5] sm:$0xff]
        %v254 = vmul.f32 %v239, %v239
        %v255 = vadd.f32 %v253, %v254
        %256 = vst [vmem:[#allocation5] sm:$0xff] %v255
        // Predicated region
        $region41: #{tpu_custom_call.1} parent=27 // pred_check
          %p257 = pneg %p231
        $region42: #{tpu_custom_call.1} parent=27 // pred_check_branch
          %259 = sbr.rel (%p257) target = $region44
        $region43: #{tpu_custom_call.1} parent=27 // pred_region
          %v260 = vld [vmem:[#allocation2] sm:$0xff]
          %v261 = vrot.slane %v260, 4
          %v262 = vadd.f32 %v260, %v261
          %v263 = vrot.slane %v262, 2
          %v264 = vadd.f32 %v262, %v263
          %v265 = vrot.slane %v264, 1
          %v266 = vadd.f32 %v264, %v265
          %267 = vst [vmem:[%s228] sm:$0x1] %v266
          %v268 = vld [vmem:[#allocation3] sm:$0xff]
          %v269 = vrot.slane %v268, 4
          %v270 = vadd.f32 %v268, %v269
          %v271 = vrot.slane %v270, 2
          %v272 = vadd.f32 %v270, %v271
          %v273 = vrot.slane %v272, 1
          %v274 = vadd.f32 %v272, %v273
          %275 = vst [vmem:[%s228 + $0x1] sm:$0x1] %v274
          %v276 = vld [vmem:[#allocation4] sm:$0xff]
          %v277 = vrot.slane %v276, 4
          %v278 = vadd.f32 %v276, %v277
          %v279 = vrot.slane %v278, 2
          %v280 = vadd.f32 %v278, %v279
          %v281 = vrot.slane %v280, 1
          %v282 = vadd.f32 %v280, %v281
          %283 = vst [vmem:[%s228 + $0x2] sm:$0x1] %v282
          %v284 = vld [vmem:[#allocation5] sm:$0xff]
          %v285 = vrot.slane %v284, 4
          %v286 = vadd.f32 %v284, %v285
          %v287 = vrot.slane %v286, 2
          %v288 = vadd.f32 %v286, %v287
          %v289 = vrot.slane %v288, 1
          %v290 = vadd.f32 %v288, %v289
          %291 = vst [vmem:[%s228 + $0x3] sm:$0x1] %v290
        $region44: #{tpu_custom_call.1} parent=27 // pred_fallthru
          _
        %s292 = sand.u32 %s111, 1
        %s293 = scalar_lea.sflag [#allocation8], %s292
        %s294 = sand.u32 %s111, 1
        %s295 = smul.addr %s294, 4
        %s296 = scalar_lea.vmem [#allocation11], %s295
        // Predicated region
        $region45: #{tpu_custom_call.1} parent=27 // pred_check
          %p297 = pneg %p121
        $region46: #{tpu_custom_call.1} parent=27 // pred_check_branch
          %299 = sbr.rel (%p297) target = $region48
        $region47: #{tpu_custom_call.1} parent=27 // pred_region
          %s301 = ssub.s32 64, 64
          %302 = vsyncadd %s293, %s301
          %s303 = sadd.s32 %s28, %s27
          %s304 = smul.addr %s303, 64
          %s305 = scalar_lea.hbm %s2, %s304
          %s307 = sshll.u32 %s296, 4
          %s308 = int_to_ptr.vmem [resolvable:$true] %s307
          %310 = dma.vmem_to_hbm [thread:$0]  %s308, 64, %s305, %s293
        $region48: #{tpu_custom_call.1} parent=27 // pred_fallthru
          _
      $region28: #{tpu_custom_call.1} parent=5 // pred_fallthru
        _
      %p311 = scmp.le.s32.totalorder 2, %s17
      // Predicated region
      $region49: #{tpu_custom_call.1} parent=5 // pred_check
        %p312 = pneg %p311
      $region50: #{tpu_custom_call.1} parent=5 // pred_check_branch
        %314 = sbr.rel (%p312) target = $region52
      $region51: #{tpu_custom_call.1} parent=5 // pred_region
        %s315 = ssub.s32 %s17, 2
        // Predicated region
        $region53: #{tpu_custom_call.1} parent=51 // pred_check
          %p316 = pneg %p127
        $region54: #{tpu_custom_call.1} parent=51 // pred_check_branch
          %318 = sbr.rel (%p316) target = $region56
        $region55: #{tpu_custom_call.1} parent=51 // pred_region
          %s319 = sand.u32 %s112, 1
          %s320 = scalar_lea.sflag [#allocation8], %s319
          %s321 = sand.u32 %s112, 1
          %s322 = smul.addr %s321, 4
          %s323 = scalar_lea.vmem [#allocation11], %s322
          %324 = dma.done %s320, 64
        $region56: #{tpu_custom_call.1} parent=51 // pred_fallthru
          _
      $region52: #{tpu_custom_call.1} parent=5 // pred_fallthru
        _
    $region6: #{tpu_custom_call.1} parent=1 // loop_footer
      %s21 = sadd.s32 1, %s17
    $region7: #{tpu_custom_call.1} parent=1 // loop_footer_branch
      %16 = sbr.rel target = $region3
    $region8: #{tpu_custom_call.1} parent=1 // loop_exit
      _
    %325 = vsyncpa [#allocation7], 1
    %s326 = scalar_lea.sflag [#allocation7], 1
    %327 = vsyncpa %s326, 1
    %328 = vsyncpa [#allocation10], 1
    %s329 = scalar_lea.sflag [#allocation10], 1
    %330 = vsyncpa %s329, 1
    %331 = vsyncpa [#allocation8], 1
    %s332 = scalar_lea.sflag [#allocation8], 1
    %333 = vsyncpa %s332, 1

</llo_original>
